<compile_context>
chip_gen: v6e
topology: v6e:2x2x1
jax: 0.10.0
libtpu: 0.0.40
codegen_flags: <defaults>
</compile_context>

<pallas_src>
import functools

import jax
import jax.numpy as jnp
from jax.experimental import pallas as pl
from jax.experimental.pallas import tpu as pltpu


# ---------------------------------------------------------------------------
# Hardware-aware knobs
# ---------------------------------------------------------------------------
def _vmem_budget():
    """(tile budget bytes, vmem_limit_bytes) based on physical VMEM size."""
    cap = 0
    try:
        cap = int(getattr(pltpu.get_tpu_info(), "vmem_capacity_bytes", 0))
    except Exception:
        cap = 0
    if cap >= 128 * 1024 * 1024:           # v5e / v6e: 128 MiB physical VMEM
        return 24 * 1024 * 1024, 64 * 1024 * 1024
    # v7x (64 MiB physical) or unknown: stay conservative.
    return 12 * 1024 * 1024, 32 * 1024 * 1024


def _chip_has_native_bf16():
    """v6e/v7x have bf16 VALU; v2-v5 do not (keep the f32 upcast there)."""
    try:
        kind = jax.devices()[0].device_kind.lower()
    except Exception:
        return False
    return not any(tag in kind for tag in ("v2", "v3", "v4", "v5"))


def _label_stream_dtype(labels_dtype, num_classes, ignore_index):
    """Narrowest integer dtype that represents [0, C) and ignore_index."""
    lo, hi = 0, max(int(num_classes) - 1, 1)
    if ignore_index is not None:
        lo = min(lo, int(ignore_index))
        hi = max(hi, int(ignore_index))
    target = jnp.dtype(jnp.int32)
    for dt in (jnp.int8, jnp.int16):
        info = jnp.iinfo(dt)
        if lo >= info.min and hi <= info.max:
            target = jnp.dtype(dt)
            break
    # Keep the caller's dtype if it is already at least as narrow.
    if (jnp.issubdtype(labels_dtype, jnp.integer)
            and jnp.dtype(labels_dtype).itemsize <= target.itemsize):
        return jnp.dtype(labels_dtype)
    return target


def _choose_tile_hw(hw, c, logit_itemsize, label_itemsize, n_lane_acc, budget):
    """Spatial tile size (multiple of 128) sized for the real VMEM footprint."""
    lane = 128
    hw_lane = pl.cdiv(hw, lane) * lane
    # double-buffered logits + labels tiles
    per_px = 2 * (c * logit_itemsize + label_itemsize)
    # f32 (C, T) intermediates (upcast temp / exp input)
    per_px += c * 4
    # (1, T) f32 lane-wide accumulators are sublane-padded to 8 rows in VMEM
    per_px += n_lane_acc * 8 * 4
    per_px += 8                              # misc slack (output blocks, etc.)
    max_tile = max(lane, (budget // per_px) // lane * lane)
    max_tile = min(max_tile, 128 * 1024)     # diminishing returns past ~128K lanes
    return min(hw_lane, max_tile)


# ---------------------------------------------------------------------------
# Per-tile focal loss
# ---------------------------------------------------------------------------
def _tile_focal(x, lbl32, blk, *, alpha, gamma, ignore_index, hw_true, tile,
                needs_spatial_mask, need_count):
    """x: (C, T) logits (native or f32), lbl32: (1, T) int32.

    Returns (focal (1,T) f32 with invalid lanes selected to 0, maskf or None).
    """
    c = x.shape[0]

    # Class-index iota as (C, 1); broadcast-compare against (1, T) labels.
    cls = jax.lax.broadcasted_iota(jnp.int32, (c, 1), 0)
    eq = lbl32 == cls                                               # (C, T)

    # Channel max and label gather stay in the native dtype (both exact);
    # only the exp-sum runs in f32.
    m = jnp.max(x, axis=0, keepdims=True)                           # (1, T)
    x_lbl = jnp.sum(jnp.where(eq, x, jnp.zeros((), x.dtype)),
                    axis=0, keepdims=True)                          # (1, T) exact
    m32 = m.astype(jnp.float32)
    s = jnp.sum(jnp.exp(x.astype(jnp.float32) - m32),
                axis=0, keepdims=True)                              # (1, T)

    ce = (m32 - x_lbl.astype(jnp.float32)) + jnp.log(s)             # (1, T)
    pt = jnp.exp(-ce)
    omp = jnp.maximum(1.0 - pt, 0.0)
    g = float(gamma)
    if g == 2.0:
        modul = omp * omp
    elif g == 1.0:
        modul = omp
    elif g == 0.0:
        modul = jnp.ones_like(omp)
    else:
        modul = omp ** g
    focal = alpha * modul * ce                                      # (1, T) f32

    mask = None
    if needs_spatial_mask:
        idx = blk * tile + jax.lax.broadcasted_iota(jnp.int32, (1, tile), 1)
        mask = idx < hw_true
    if ignore_index is not None:
        # TODO(synk): labels outside [0, C) that are not ignore_index give a
        # finite-but-wrong loss instead of erroring like torch cross_entropy.
        keep = lbl32 != ignore_index
        mask = keep if mask is None else jnp.logical_and(mask, keep)

    if mask is not None:
        # Select (not multiply): garbage tail / non-finite logits cannot
        # propagate NaN/Inf into the reduction.
        focal = jnp.where(mask, focal, 0.0)

    maskf = None
    if need_count:
        maskf = (jnp.where(mask, 1.0, 0.0).astype(jnp.float32)
                 if mask is not None else jnp.ones_like(focal))
    return focal, maskf


# ---------------------------------------------------------------------------
# Kernels
# ---------------------------------------------------------------------------
def _focal_reduce_kernel(logits_ref, labels_ref, *refs, alpha, gamma,
                         ignore_index, hw_true, tile, half, upcast,
                         needs_spatial_mask, need_count):
    if need_count:
        sum_ref, cnt_ref, acc_f, acc_n = refs
    else:
        sum_ref, acc_f = refs
        cnt_ref = acc_n = None

    j = pl.program_id(2)

    @pl.when(j == 0)
    def _():
        acc_f[...] = jnp.zeros_like(acc_f)
        if need_count:
            acc_n[...] = jnp.zeros_like(acc_n)

    x = logits_ref[0]                         # (C, T) native dtype
    if upcast:
        x = x.astype(jnp.float32)             # single up-front cast (v5e path)
    lbl = labels_ref[0].astype(jnp.int32)     # (1, T) widened in VMEM

    blk = pl.program_id(1) * half + j         # logical (unclamped) hw block
    focal, maskf = _tile_focal(
        x, lbl, blk, alpha=alpha, gamma=gamma, ignore_index=ignore_index,
        hw_true=hw_true, tile=tile, needs_spatial_mask=needs_spatial_mask,
        need_count=need_count)

    acc_f[...] += focal                       # lane-wide; cross-lane reduce deferred
    if need_count:
        acc_n[...] += maskf

    @pl.when(j == pl.num_programs(2) - 1)
    def _():
        sum_ref[0] = jnp.sum(acc_f[...], keepdims=True)
        if need_count:
            cnt_ref[0] = jnp.sum(acc_n[...], keepdims=True)


def _focal_map_kernel(logits_ref, labels_ref, out_ref, *, alpha, gamma,
                      ignore_index, hw_true, tile, upcast):
    x = logits_ref[0]
    if upcast:
        x = x.astype(jnp.float32)
    lbl = labels_ref[0].astype(jnp.int32)
    focal, _ = _tile_focal(
        x, lbl, pl.program_id(1), alpha=alpha, gamma=gamma,
        ignore_index=ignore_index, hw_true=hw_true, tile=tile,
        needs_spatial_mask=False,      # partial output blocks only write valid lanes
        need_count=False)
    out_ref[0] = focal


# ---------------------------------------------------------------------------
# Wrapper
# ---------------------------------------------------------------------------
def focal_loss_pallas(logits, labels, *, alpha=0.25, gamma=2.0,
                      reduction="mean", ignore_index=None, tile_hw=None):
    """logits: (b, c, h, w); labels: (b, h, w) or (b, 1, h, w) integer ids."""
    b, c, h, w = logits.shape
    hw = h * w
    logits3 = logits.reshape(b, c, hw)                    # native dtype stream
    ldt = _label_stream_dtype(labels.dtype, c, ignore_index)
    labels3 = labels.reshape(b, 1, hw)
    if labels3.dtype != ldt:
        labels3 = labels3.astype(ldt)

    lsz = jnp.dtype(logits3.dtype).itemsize
    lbsz = jnp.dtype(labels3.dtype).itemsize
    upcast = (logits3.dtype != jnp.float32) and not (
        logits3.dtype == jnp.bfloat16 and _chip_has_native_bf16())

    need_count = (reduction == "mean") and (ignore_index is not None)
    budget, vmem_limit = _vmem_budget()

    if tile_hw is not None:
        tile = min(pl.cdiv(hw, 128) * 128, pl.cdiv(int(tile_hw), 128) * 128)
    else:
        tile = _choose_tile_hw(hw, c, lsz, lbsz, 2 if need_count else 1, budget)
    grid_hw = pl.cdiv(hw, tile)

    common = dict(alpha=float(alpha), gamma=float(gamma),
                  ignore_index=ignore_index, hw_true=hw, tile=tile,
                  upcast=upcast)
    out_bytes = (2 * b * 4) if reduction in ("mean", "sum") else (b * hw * 4)
    cost = pl.CostEstimate(
        flops=8 * b * c * hw + 12 * b * hw,
        transcendentals=b * c * hw + 2 * b * hw,
        bytes_accessed=b * c * hw * lsz + b * hw * lbsz + out_bytes)

    if reduction in ("mean", "sum"):
        # Extra 2-way 'parallel' axis over the spatial tiles keeps both v7x
        # TensorCores busy even at b == 1 (structurally a no-op on 1-TC chips).
        num_splits = 2 if grid_hw >= 2 else 1
        half = pl.cdiv(grid_hw, num_splits)
        last_blk = grid_hw - 1
        clamp = (num_splits * half) != grid_hw

        def hw_block(i, p, j):
            blk = p * half + j
            if clamp:   # odd grid: clamp the duplicate block in-bounds; it is
                        # excluded from the sums by the spatial mask.
                blk = jnp.minimum(blk, last_blk)
            return blk

        needs_spatial_mask = (num_splits * half * tile) != hw

        in_specs = [
            pl.BlockSpec((1, c, tile), lambda i, p, j: (i, 0, hw_block(i, p, j))),
            pl.BlockSpec((1, 1, tile), lambda i, p, j: (i, 0, hw_block(i, p, j))),
        ]
        out_shape = [jax.ShapeDtypeStruct((b, num_splits, 1), jnp.float32)]
        out_specs = [pl.BlockSpec((1, 1, 1), lambda i, p, j: (i, p, 0))]
        scratch = [pltpu.VMEM((1, tile), jnp.float32)]
        if need_count:
            out_shape.append(jax.ShapeDtypeStruct((b, num_splits, 1), jnp.float32))
            out_specs.append(pl.BlockSpec((1, 1, 1), lambda i, p, j: (i, p, 0)))
            scratch.append(pltpu.VMEM((1, tile), jnp.float32))

        kernel = functools.partial(
            _focal_reduce_kernel, half=half,
            needs_spatial_mask=needs_spatial_mask, need_count=need_count,
            **common)
        outs = pl.pallas_call(
            kernel,
            out_shape=tuple(out_shape),
            grid_spec=pltpu.PrefetchScalarGridSpec(
                num_scalar_prefetch=0,
                grid=(b, num_splits, half),
                in_specs=in_specs,
                out_specs=tuple(out_specs),
                scratch_shapes=scratch),
            compiler_params=pltpu.CompilerParams(
                dimension_semantics=("parallel", "parallel", "arbitrary"),
                vmem_limit_bytes=vmem_limit),
            cost_estimate=cost,
        )(logits3, labels3)

        total = jnp.sum(outs[0])
        if reduction == "sum":
            return total
        denom = jnp.sum(outs[1]) if need_count else jnp.float32(b * hw)
        return total / denom

    # reduction == 'none' (or anything else, mirroring the PyTorch else-branch)
    # TODO(synk): PyTorch returns only the non-ignored pixels (dynamic shape,
    # no clean Pallas/JAX equivalent); we return per-pixel losses with ignored
    # pixels zeroed, flattened to (b*h*w,).
    kernel = functools.partial(_focal_map_kernel, **common)
    per_pix = pl.pallas_call(
        kernel,
        out_shape=jax.ShapeDtypeStruct((b, 1, hw), jnp.float32),
        grid_spec=pltpu.PrefetchScalarGridSpec(
            num_scalar_prefetch=0,
            grid=(b, grid_hw),
            in_specs=[pl.BlockSpec((1, c, tile), lambda i, j: (i, 0, j)),
                      pl.BlockSpec((1, 1, tile), lambda i, j: (i, 0, j))],
            out_specs=pl.BlockSpec((1, 1, tile), lambda i, j: (i, 0, j)),
        ),
        compiler_params=pltpu.CompilerParams(
            dimension_semantics=("parallel", "parallel"),
            vmem_limit_bytes=vmem_limit),
        cost_estimate=cost,
    )(logits3, labels3)
    return per_pix.reshape(-1)


# ---------------------------------------------------------------------------
# Pure-JAX reference mirroring the PyTorch forward
# ---------------------------------------------------------------------------
def _focal_loss_ref(logits, labels, alpha=0.25, gamma=2.0, reduction="mean",
                    ignore_index=None):
    b, c, h, w = logits.shape
    x = jnp.transpose(logits, (0, 2, 3, 1)).reshape(-1, c).astype(jnp.float32)
    y = labels.reshape(-1).astype(jnp.int32)
    keep = jnp.ones_like(y, dtype=bool) if ignore_index is None else (y != ignore_index)
    y_safe = jnp.where(keep, y, 0)
    logp = jax.nn.log_softmax(x, axis=-1)
    ce = -jnp.take_along_axis(logp, y_safe[:, None], axis=-1)[:, 0]
    pt = jnp.exp(-ce)
    focal = alpha * (1.0 - pt) ** gamma * ce
    focal = jnp.where(keep, focal, 0.0)
    if reduction == "mean":
        return jnp.sum(focal) / jnp.sum(keep.astype(jnp.float32))
    elif reduction == "sum":
        return jnp.sum(focal)
    return focal


if __name__ == "__main__":
    key = jax.random.PRNGKey(0)
    k1, k2 = jax.random.split(key)

    B, C, H, W = 2, 4, 16, 16
    logits = jax.random.normal(k1, (B, C, H, W), dtype=jnp.float32)
    labels = jax.random.randint(k2, (B, H, W), 0, C, dtype=jnp.int32)

    for kw, tol in ((dict(reduction="mean"), 1e-5),
                    (dict(reduction="sum"), 1e-4),
                    (dict(reduction="mean", ignore_index=2), 1e-5)):
        out = jax.block_until_ready(
            focal_loss_pallas(logits, labels, alpha=0.25, gamma=2.0, **kw))
        ref = _focal_loss_ref(logits, labels, alpha=0.25, gamma=2.0, **kw)
        assert jnp.allclose(out, ref, atol=tol, rtol=1e-5), (kw, out, ref)

    out_none = jax.block_until_ready(
        focal_loss_pallas(logits, labels, reduction="none"))
    ref_none = _focal_loss_ref(logits, labels, reduction="none")
    assert jnp.allclose(out_none, ref_none, atol=1e-5, rtol=1e-5)

    # Stress the pad-free tail masking + 2-way-split spatial grid (hw = 272 is
    # not a multiple of 128; forced tile=128 gives an odd block count).
    H2, W2 = 16, 17
    logits2 = jax.random.normal(k1, (B, C, H2, W2), dtype=jnp.float32)
    labels2 = jax.random.randint(k2, (B, H2, W2), 0, C, dtype=jnp.int32)
    out2 = jax.block_until_ready(
        focal_loss_pallas(logits2, labels2, reduction="mean", ignore_index=1,
                          tile_hw=128))
    ref2 = _focal_loss_ref(logits2, labels2, reduction="mean", ignore_index=1)
    assert jnp.allclose(out2, ref2, atol=1e-5, rtol=1e-5), (out2, ref2)

    print("KERNEL_OK")
</pallas_src>

<mosaic_0001>
module attributes {stable_mosaic.version = 11 : i64} {
  func.func @_focal_reduce_kernel(%arg0: i32, %arg1: i32, %arg2: i32, %arg3: memref<1x4x256xf32, #tpu.memory_space<vmem>>, %arg4: memref<1x1x256xi8, #tpu.memory_space<vmem>>, %arg5: memref<1x1x1xf32, #tpu.memory_space<vmem>>, %arg6: memref<1x256xf32, #tpu.memory_space<vmem>>) attributes {dimension_semantics = [#tpu.dimension_semantics<parallel>, #tpu.dimension_semantics<parallel>, #tpu.dimension_semantics<arbitrary>], iteration_bounds = array<i64: 2, 1, 1>, scalar_prefetch = 0 : i64, scratch_operands = 1 : i64, tpu.core_type = #tpu.core_type<tc>, window_params = [{transform_indices = @transform_0, window_bounds = array<i64: 1, 4, 256>}, {transform_indices = @transform_1, window_bounds = array<i64: 1, 1, 256>}, {transform_indices = @transform_2, window_bounds = array<i64: 1, 1, 1>}]} {
    %c0_i32 = arith.constant 0 : i32
    %0 = arith.cmpi eq, %arg2, %c0_i32 : i32
    %1 = arith.extui %0 : i1 to i32
    %c0_i32_0 = arith.constant 0 : i32
    %2 = arith.cmpi ne, %1, %c0_i32_0 : i32
    scf.if %2 {
      %cst_19 = arith.constant 0.000000e+00 : f32
      %43 = vector.broadcast %cst_19 : f32 to vector<1x256xf32>
      %c0_20 = arith.constant 0 : index
      %c0_21 = arith.constant 0 : index
      %44 = vector.load %arg6[%c0_20, %c0_21] : memref<1x256xf32, #tpu.memory_space<vmem>>, vector<1x256xf32>
      tpu.vector_store %arg6[%c0_20, %c0_21], %43 {strides = array<i32>} : memref<1x256xf32, #tpu.memory_space<vmem>>, vector<1x256xf32>,
    } else {
    }
    %c0 = arith.constant 0 : index
    %c0_1 = arith.constant 0 : index
    %c0_2 = arith.constant 0 : index
    %3 = vector.load %arg3[%c0, %c0_1, %c0_2] : memref<1x4x256xf32, #tpu.memory_space<vmem>>, vector<1x4x256xf32>
    %4 = vector.shape_cast %3 : vector<1x4x256xf32> to vector<4x256xf32>
    %c0_3 = arith.constant 0 : index
    %c0_4 = arith.constant 0 : index
    %c0_5 = arith.constant 0 : index
    %5 = vector.load %arg4[%c0_3, %c0_4, %c0_5] : memref<1x1x256xi8, #tpu.memory_space<vmem>>, vector<1x1x256xi8>
    %6 = vector.shape_cast %5 : vector<1x1x256xi8> to vector<1x256xi8>
    %7 = arith.extsi %6 : vector<1x256xi8> to vector<1x256xi32>
    %8 = tpu.iota {dimensions = array<i32: 0>} : vector<4x1xi32>
    %9 = vector.broadcast %7 : vector<1x256xi32> to vector<4x256xi32>
    %10 = vector.broadcast %8 : vector<4x1xi32> to vector<4x256xi32>
    %11 = arith.cmpi eq, %9, %10 : vector<4x256xi32>
    %cst = arith.constant dense<0xFF800000> : vector<256xf32>
    %12 = vector.multi_reduction <maximumf>, %4, %cst [0] : vector<4x256xf32> to vector<256xf32>
    %13 = vector.shape_cast %12 : vector<256xf32> to vector<1x256xf32>
    %cst_6 = arith.constant 0.000000e+00 : f32
    %14 = vector.broadcast %cst_6 : f32 to vector<4x256xf32>
    %15 = arith.select %11, %4, %14 : vector<4x256xi1>, vector<4x256xf32>
    %cst_7 = arith.constant dense<0.000000e+00> : vector<256xf32>
    %16 = vector.multi_reduction <add>, %15, %cst_7 [0] : vector<4x256xf32> to vector<256xf32>
    %17 = vector.shape_cast %16 : vector<256xf32> to vector<1x256xf32>
    %18 = vector.broadcast %13 : vector<1x256xf32> to vector<4x256xf32>
    %19 = arith.subf %4, %18 : vector<4x256xf32>
    %20 = math.exp %19 : vector<4x256xf32>
    %cst_8 = arith.constant dense<0.000000e+00> : vector<256xf32>
    %21 = vector.multi_reduction <add>, %20, %cst_8 [0] : vector<4x256xf32> to vector<256xf32>
    %22 = vector.shape_cast %21 : vector<256xf32> to vector<1x256xf32>
    %23 = arith.subf %13, %17 : vector<1x256xf32>
    %24 = math.log %22 : vector<1x256xf32>
    %25 = arith.addf %23, %24 : vector<1x256xf32>
    %cst_9 = arith.constant 0.000000e+00 : f32
    %26 = vector.broadcast %cst_9 : f32 to vector<1x256xf32>
    %27 = arith.subf %26, %25 : vector<1x256xf32>
    %28 = math.exp %27 : vector<1x256xf32>
    %cst_10 = arith.constant 1.000000e+00 : f32
    %29 = vector.broadcast %cst_10 : f32 to vector<1x256xf32>
    %30 = arith.subf %29, %28 : vector<1x256xf32>
    %cst_11 = arith.constant 0.000000e+00 : f32
    %31 = vector.broadcast %cst_11 : f32 to vector<1x256xf32>
    %32 = arith.maximumf %30, %31 : vector<1x256xf32>
    %33 = arith.mulf %32, %32 : vector<1x256xf32>
    %cst_12 = arith.constant 2.500000e-01 : f32
    %34 = vector.broadcast %cst_12 : f32 to vector<1x256xf32>
    %35 = arith.mulf %34, %33 : vector<1x256xf32>
    %36 = arith.mulf %35, %25 : vector<1x256xf32>
    %c0_13 = arith.constant 0 : index
    %c0_14 = arith.constant 0 : index
    %37 = vector.load %arg6[%c0_13, %c0_14] : memref<1x256xf32, #tpu.memory_space<vmem>>, vector<1x256xf32>
    %38 = arith.addf %37, %36 : vector<1x256xf32>
    %c0_15 = arith.constant 0 : index
    %c0_16 = arith.constant 0 : index
    %39 = vector.load %arg6[%c0_15, %c0_16] : memref<1x256xf32, #tpu.memory_space<vmem>>, vector<1x256xf32>
    tpu.vector_store %arg6[%c0_15, %c0_16], %38 {strides = array<i32>} : memref<1x256xf32, #tpu.memory_space<vmem>>, vector<1x256xf32>,
    %c0_i32_17 = arith.constant 0 : i32
    %40 = arith.cmpi eq, %arg2, %c0_i32_17 : i32
    %41 = arith.extui %40 : i1 to i32
    %c0_i32_18 = arith.constant 0 : i32
    %42 = arith.cmpi ne, %41, %c0_i32_18 : i32
    scf.if %42 {
      %c0_19 = arith.constant 0 : index
      %c0_20 = arith.constant 0 : index
      %43 = vector.load %arg6[%c0_19, %c0_20] : memref<1x256xf32, #tpu.memory_space<vmem>>, vector<1x256xf32>
      %44 = vector.shape_cast %43 : vector<1x256xf32> to vector<1x1x256xf32>
      %cst_21 = arith.constant dense<0.000000e+00> : vector<1xf32>
      %45 = vector.multi_reduction <add>, %44, %cst_21 [1, 2] : vector<1x1x256xf32> to vector<1xf32>
      %46 = vector.shape_cast %45 : vector<1xf32> to vector<1x1x1xf32>
      %47 = vector.extract %46[0, 0, 0] : f32 from vector<1x1x1xf32>
      %48 = vector.broadcast %47 : f32 to vector<1x1xf32>
      %c0_22 = arith.constant 0 : index
      %c0_23 = arith.constant 0 : index
      %c0_24 = arith.constant 0 : index
      %49 = vector.load %arg5[%c0_22, %c0_23, %c0_24] : memref<1x1x1xf32, #tpu.memory_space<vmem>>, vector<1x1x1xf32>
      %50 = vector.shape_cast %49 : vector<1x1x1xf32> to vector<1x1xf32>
      %51 = vector.shape_cast %48 : vector<1x1xf32> to vector<1x1x1xf32>
      tpu.vector_store %arg5[%c0_22, %c0_23, %c0_24], %51 {strides = array<i32>} : memref<1x1x1xf32, #tpu.memory_space<vmem>>, vector<1x1x1xf32>,
    } else {
    }
    return
  }
  func.func @transform_0(%arg0: i32, %arg1: i32, %arg2: i32) -> (i32, i32, i32) {
    %c1_i32 = arith.constant 1 : i32
    %0 = arith.muli %arg1, %c1_i32 : i32
    %1 = arith.addi %0, %arg2 : i32
    %c0_i32 = arith.constant 0 : i32
    %c0_i32_0 = arith.constant 0 : i32
    return %arg0, %c0_i32, %1 : i32, i32, i32
  }
  func.func @transform_1(%arg0: i32, %arg1: i32, %arg2: i32) -> (i32, i32, i32) {
    %c1_i32 = arith.constant 1 : i32
    %0 = arith.muli %arg1, %c1_i32 : i32
    %1 = arith.addi %0, %arg2 : i32
    %c0_i32 = arith.constant 0 : i32
    %c0_i32_0 = arith.constant 0 : i32
    return %arg0, %c0_i32, %1 : i32, i32, i32
  }
  func.func @transform_2(%arg0: i32, %arg1: i32, %arg2: i32) -> (i32, i32, i32) {
    %c0_i32 = arith.constant 0 : i32
    %c0_i32_0 = arith.constant 0 : i32
    return %arg0, %arg1, %c0_i32 : i32, i32, i32
  }
}

</mosaic_0001>

<llo_original>
// kernel: tpu_custom_call.1
$region0: #{tpu_custom_call.1}
  #allocation0 [shape = 'u32[]', space=smem, size = 0x4, offset = 0x4, fixed_abs, tag = 'smem constant byte address 0x4 - core index']
  #allocation1 [shape = 'u32[144,128]{1,0:T(1,128)}', space=vmem, size = 0x12000, scoped, tag = 'internal scratch']
  #allocation2 [shape = 'f32[1,256]{1,0:T(1,128)}', space=vmem, size = 0x400, scoped, tag = 'scratch operand']
  %s0 = inlined_call_operand.hbm [shape: f32[2,4,256], index: 0, kind: input, shape index: {}]
  %s1 = inlined_call_operand.vmem [shape: s8[2,1,256], index: 1, kind: input, shape index: {}]
  %s2 = inlined_call_operand.vmem [shape: f32[2,1,1], index: 2, kind: output, shape index: {}]
  %s3 = sld [smem:[#allocation0]]
  $region53: #{tpu_custom_call.1} parent=0
    _
  %s5 = ssub.s32 1, %s3
  %s6 = scalar_select 0, %s5, %s3
  $region1: #{tpu_custom_call.1} parent=0
    #allocation3 [shape = 'u8[8192]{0}', space=vmem, size = 0x2000, scoped, tag = 'input window, operand 0']
    #allocation4 [shape = 's32[2]{0}', space=sflag, size = 0x8, scoped, tag = 'scoped memory for tpu_custom_call.1']
    %7 = vsyncpa [#allocation4], 0
    %s8 = scalar_lea.sflag [#allocation4], 1
    %9 = vsyncpa %s8, 0
    loop: start=0, step=1, limit=4
    $region2: #{tpu_custom_call.1} parent=1 // loop_pre_header
      _
    $region3: #{tpu_custom_call.1} parent=1 // loop_header
      %s11 = sphi 0, %s15
      %p12 = scmp.ge.s32.totalorder %s11, 4
      %s18 = sphi 0, %s37
      %s19 = sphi 0, %s33
      %s20 = sphi 0, %s29
      %s21 = sphi 0, %s18
      %s22 = sphi 0, %s19
      %s23 = sphi 0, %s20
      %s24 = sphi 0, %s21
      %s25 = sphi 0, %s22
      %s26 = sphi 0, %s23
      %s44 = sphi 0, %s46
      %s47 = sphi 0, %s44
      %s48 = sphi 0, %s47
      %s64 = sphi 0, %s48
      %s74 = sphi 0, %s76
      %s77 = sphi 0, %s74
      %s78 = sphi 0, %s77
      %s94 = sphi 0, %s78
      %s102 = sphi 0, %s104
      %s105 = sphi 0, %s102
      %s106 = sphi 0, %s105
      %s122 = sphi 0, %s106
    $region4: #{tpu_custom_call.1} parent=1 // loop_header_branch
      %14 = sbr.rel (%p12) target = $region8
    $region5: #{tpu_custom_call.1} parent=1 // loop_body
      %s16 = ssub.s32 %s11, 1
      %s17 = ssub.s32 %s11, 2
      %s27 = sadd.s32 1, %s20
      %p28 = scmp.ge.s32.totalorder %s27, 1
      %s29 = scalar_select %p28, 0, %s27
      %s30 = sadd.s32 1, %s19
      %s31 = scalar_select %p28, %s30, %s19
      %p32 = scmp.ge.s32.totalorder %s31, 1
      %s33 = scalar_select %p32, 0, %s31
      %s34 = sadd.s32 1, %s18
      %s35 = scalar_select %p32, %s34, %s18
      %p36 = scmp.ge.s32.totalorder %s35, 2
      %s37 = scalar_select %p36, 0, %s35
      %s38 = sadd.s32 %s19, %s20
      %s39 = sadd.s32 %s33, %s29
      %s40 = ssub.s32 %s18, %s37
      %s41 = ssub.s32 %s38, %s39
      %s42 = sor.u32 %s40, %s41
      %p43 = scmp.eq.s32.totalorder %s42, 0
      %s45 = sadd.s32 %s44, 1
      %s46 = scalar_select %p43, %s44, %s45
      %p49 = pneg %p43
      %p50 = scmp.eq.s32.totalorder %s11, 1
      %p51 = por %p49, %p50
      %p52 = scmp.ne.s32.totalorder %s44, %s47
      %p53 = scmp.eq.s32.totalorder %s11, 0
      %p54 = por %p52, %p53
      %p55 = scmp.ne.s32.totalorder %s44, %s47
      %p56 = scmp.eq.s32.totalorder %s16, 1
      %p57 = por %p55, %p56
      %p58 = scmp.ne.s32.totalorder %s47, %s48
      %p59 = scmp.eq.s32.totalorder %s16, 0
      %p60 = por %p58, %p59
      %p61 = scmp.ne.s32.totalorder %s47, %s48
      %p62 = scmp.eq.s32.totalorder %s17, 1
      %p63 = por %p61, %p62
      %p65 = scmp.ne.s32.totalorder %s48, %s64
      %p66 = scmp.eq.s32.totalorder %s17, 0
      %p67 = por %p65, %p66
      %s68 = sadd.s32 %s19, %s20
      %s69 = sadd.s32 %s33, %s29
      %s70 = ssub.s32 %s18, %s37
      %s71 = ssub.s32 %s68, %s69
      %s72 = sor.u32 %s70, %s71
      %p73 = scmp.eq.s32.totalorder %s72, 0
      %s75 = sadd.s32 %s74, 1
      %s76 = scalar_select %p73, %s74, %s75
      %p79 = pneg %p73
      %p80 = scmp.eq.s32.totalorder %s11, 1
      %p81 = por %p79, %p80
      %p82 = scmp.ne.s32.totalorder %s74, %s77
      %p83 = scmp.eq.s32.totalorder %s11, 0
      %p84 = por %p82, %p83
      %p85 = scmp.ne.s32.totalorder %s74, %s77
      %p86 = scmp.eq.s32.totalorder %s16, 1
      %p87 = por %p85, %p86
      %p88 = scmp.ne.s32.totalorder %s77, %s78
      %p89 = scmp.eq.s32.totalorder %s16, 0
      %p90 = por %p88, %p89
      %p91 = scmp.ne.s32.totalorder %s77, %s78
      %p92 = scmp.eq.s32.totalorder %s17, 1
      %p93 = por %p91, %p92
      %p95 = scmp.ne.s32.totalorder %s78, %s94
      %p96 = scmp.eq.s32.totalorder %s17, 0
      %p97 = por %p95, %p96
      %s98 = ssub.s32 %s18, %s37
      %s99 = ssub.s32 %s19, %s33
      %s100 = sor.u32 %s98, %s99
      %p101 = scmp.eq.s32.totalorder %s100, 0
      %s103 = sadd.s32 %s102, 1
      %s104 = scalar_select %p101, %s102, %s103
      %p107 = pneg %p101
      %p108 = scmp.eq.s32.totalorder %s11, 1
      %p109 = por %p107, %p108
      %p110 = scmp.ne.s32.totalorder %s102, %s105
      %p111 = scmp.eq.s32.totalorder %s11, 0
      %p112 = por %p110, %p111
      %p113 = scmp.ne.s32.totalorder %s102, %s105
      %p114 = scmp.eq.s32.totalorder %s16, 1
      %p115 = por %p113, %p114
      %p116 = scmp.ne.s32.totalorder %s105, %s106
      %p117 = scmp.eq.s32.totalorder %s16, 0
      %p118 = por %p116, %p117
      %p119 = scmp.ne.s32.totalorder %s105, %s106
      %p120 = scmp.eq.s32.totalorder %s17, 1
      %p121 = por %p119, %p120
      %p123 = scmp.ne.s32.totalorder %s106, %s122
      %p124 = scmp.eq.s32.totalorder %s17, 0
      %p125 = por %p123, %p124
      %p126 = scmp.le.s32.totalorder 1, %s11
      %p127 = scmp.lt.s32.totalorder %s11, 3
      %p128 = pnand %p126, %p127
      %p129 = pneg %p128
      // Predicated region
      $region9: #{tpu_custom_call.1} parent=5 // pred_check
        _
      $region10: #{tpu_custom_call.1} parent=5 // pred_check_branch
        %131 = sbr.rel (%p128) target = $region12
      $region11: #{tpu_custom_call.1} parent=5 // pred_region
        %s132 = ssub.s32 %s11, 1
      $region12: #{tpu_custom_call.1} parent=5 // pred_fallthru
        _
      %p133 = scmp.lt.s32.totalorder %s11, 2
      // Predicated region
      $region13: #{tpu_custom_call.1} parent=5 // pred_check
        %p134 = pneg %p133
      $region14: #{tpu_custom_call.1} parent=5 // pred_check_branch
        %136 = sbr.rel (%p134) target = $region16
      $region15: #{tpu_custom_call.1} parent=5 // pred_region
        // Predicated region
        $region17: #{tpu_custom_call.1} parent=15 // pred_check
          %p137 = pneg %p54
        $region18: #{tpu_custom_call.1} parent=15 // pred_check_branch
          %139 = sbr.rel (%p137) target = $region20
        $region19: #{tpu_custom_call.1} parent=15 // pred_region
          %s140 = sand.u32 %s44, 1
          %s141 = scalar_lea.sflag [#allocation4], %s140
          %s142 = sand.u32 %s44, 1
          %s143 = smul.addr %s142, 8
          %s144 = scalar_lea.vmem [#allocation3], %s143
          %s145 = sadd.s32 %s19, %s20
          %s146 = smul.u32 2, %s145
          %s148 = ssub.s32 128, 128
          %149 = vsyncadd %s141, %s148
          %s150 = smul.addr %s18, 2
          %s151 = sadd.s32 %s146, %s150
          %s152 = smul.addr %s151, 64
          %s153 = scalar_lea.hbm %s0, %s152
          %s155 = sshll.u32 %s144, 4
          %s156 = int_to_ptr.vmem [resolvable:$true] %s155
          %158 = dma.hbm_to_vmem [thread:$0]  %s153, 128, %s156, %s141
        $region20: #{tpu_custom_call.1} parent=15 // pred_fallthru
          _
        // Predicated region
        $region21: #{tpu_custom_call.1} parent=15 // pred_check
          %p159 = pneg %p84
        $region22: #{tpu_custom_call.1} parent=15 // pred_check_branch
          %161 = sbr.rel (%p159) target = $region24
        $region23: #{tpu_custom_call.1} parent=15 // pred_region
          %s162 = sadd.s32 %s19, %s20
          %s163 = smul.u32 2, %s162
          %p164 = scmp.lt.s32.totalorder %s18, 1
          %s165 = scalar_select %p164, %s18, 1
          %p166 = scmp.lt.s32.totalorder %s163, 1
          %s167 = scalar_select %p166, %s163, 1
          %s168 = smul.addr %s165, 2
          %s169 = sadd.s32 %s167, %s168
          %s170 = scalar_lea.vmem %s1, %s169
          %s171 = sadd.s32 %s19, %s20
          %s172 = smul.u32 2, %s171
        $region24: #{tpu_custom_call.1} parent=15 // pred_fallthru
          _
      $region16: #{tpu_custom_call.1} parent=5 // pred_fallthru
        _
      %p173 = scmp.le.s32.totalorder 1, %s11
      %p174 = scmp.lt.s32.totalorder %s11, 3
      %p175 = pnand %p173, %p174
      %p176 = pneg %p175
      // Predicated region
      $region25: #{tpu_custom_call.1} parent=5 // pred_check
        _
      $region26: #{tpu_custom_call.1} parent=5 // pred_check_branch
        %178 = sbr.rel (%p175) target = $region28
      $region27: #{tpu_custom_call.1} parent=5 // pred_region
        %s179 = ssub.s32 %s11, 1
        %s180 = sand.u32 %s47, 1
        %s181 = scalar_lea.sflag [#allocation4], %s180
        %s182 = sand.u32 %s47, 1
        %s183 = smul.addr %s182, 8
        %s184 = scalar_lea.vmem [#allocation3], %s183
        // Predicated region
        $region29: #{tpu_custom_call.1} parent=27 // pred_check
          %p185 = pneg %p60
        $region30: #{tpu_custom_call.1} parent=27 // pred_check_branch
          %187 = sbr.rel (%p185) target = $region32
        $region31: #{tpu_custom_call.1} parent=27 // pred_region
          %188 = dma.done %s181, 128
        $region32: #{tpu_custom_call.1} parent=27 // pred_fallthru
          _
        %s189 = sand.u32 %s47, 1
        %s190 = scalar_lea.sflag [#allocation4], %s189
        %s191 = sand.u32 %s47, 1
        %s192 = smul.addr %s191, 8
        %s193 = scalar_lea.vmem [#allocation3], %s192
        %p194 = pneg %p60
        %p195 = pneg %p57
        %s196 = sadd.s32 %s22, %s23
        %s197 = smul.u32 2, %s196
        %p198 = scmp.lt.s32.totalorder %s21, 1
        %s199 = scalar_select %p198, %s21, 1
        %p200 = scmp.lt.s32.totalorder %s197, 1
        %s201 = scalar_select %p200, %s197, 1
        %s202 = smul.addr %s199, 2
        %s203 = sadd.s32 %s201, %s202
        %s204 = scalar_lea.vmem %s1, %s203
        %p205 = pneg %p90
        %p206 = pneg %p87
        %p207 = pneg %p118
        %p208 = pneg %p115
        %p209 = scmp.lt.s32.totalorder %s21, 1
        %s210 = scalar_select %p209, %s21, 1
        %p211 = scmp.lt.s32.totalorder %s22, 0
        %s212 = scalar_select %p211, %s22, 0
        %s213 = sadd.s32 %s212, %s210
        %s214 = scalar_lea.vmem %s2, %s213
        %s215 = sadd.s32 %s22, %s23
        %s216 = smul.u32 2, %s215
        %s217 = sadd.s32 %s22, %s23
        %s218 = smul.u32 2, %s217
        %p219 = scmp.lt.s32.totalorder %s21, 1
        %s220 = scalar_select %p219, %s21, 1
        %p221 = scmp.lt.s32.totalorder %s218, 1
        %s222 = scalar_select %p221, %s218, 1
        %s223 = smul.addr %s220, 2
        %s224 = sadd.s32 %s222, %s223
        %s225 = scalar_lea.vmem %s1, %s224
        %s226 = sadd.s32 %s22, %s23
        %s227 = smul.u32 2, %s226
        %p228 = scmp.lt.s32.totalorder %s21, 1
        %s229 = scalar_select %p228, %s21, 1
        %p230 = scmp.lt.s32.totalorder %s22, 0
        %s231 = scalar_select %p230, %s22, 0
        %s232 = sadd.s32 %s231, %s229
        %s233 = scalar_lea.vmem %s2, %s232
        %p234 = scmp.eq.s32.totalorder %s23, 0
        // Predicated region
        $region33: #{tpu_custom_call.1} parent=27 // pred_check
          %p235 = pneg %p234
        $region34: #{tpu_custom_call.1} parent=27 // pred_check_branch
          %237 = sbr.rel (%p235) target = $region36
        $region35: #{tpu_custom_call.1} parent=27 // pred_region
          %v238 = vlaneseq
          %vm239 = vcmp.ge.s32.totalorder %v238, 0
          %vm240 = vcmp.lt.s32.totalorder %v238, 256
          %vm241 = vmand %vm239, %vm240
          %242 = vst.msk [vmem:[#allocation2] sm:$0x3] %vm241, 0.0
        $region36: #{tpu_custom_call.1} parent=27 // pred_fallthru
          _
        %v243 = vld [vmem:[%s184] sm:$0xff]
        %v244 = vld [vmem:[%s225] sm:$0x3]
        %v245 = vunpack.c.0.s8 %v244
        %v246 = vlaneseq
        %v247 = vshrl.u32 %v246, 7
        %v248 = vlaneseq
        %v249 = vshrl.u32 %v248, 7
        %v250 = vsub.s32 0, %v249
        %v251 = vrot.slane %v245, %v250
        %v252 = vlaneseq
        %v253 = vshrl.u32 %v252, 7
        %v254 = vsub.s32 4, %v253
        %v255 = vrot.slane %v245, %v254
        %v256 = vlaneseq
        %v257 = vshrl.u32 %v256, 7
        %v258 = vsub.s32 0, %v257
        %v259 = vrot.slane %v251, %v258
        %v260 = vlaneseq
        %v261 = vshrl.u32 %v260, 7
        %v262 = vsub.s32 0, %v261
        %v263 = vrot.slane %v255, %v262
        %vm264 = vcmp.eq.s32.totalorder %v259, %v247
        %vm265 = vcmp.eq.s32.totalorder %v263, %v247
        %v267 = vcombine.high %v243, %v243
        %vm269 = vcmask 1043456
        %v270 = vsel %vm269, %v243, -inf
        %v271 = vrot.slane %v270, 4
        %v272 = vmax.f32 %v270, %v271
        %v273 = vrot.slane %v272, 2
        %v274 = vmax.f32 %v272, %v273
        %v275 = vrot.slane %v274, 1
        %v276 = vmax.f32 %v274, %v275
        %v277 = vsel %vm269, %v267, -inf
        %v278 = vrot.slane %v277, 4
        %v279 = vmax.f32 %v277, %v278
        %v280 = vrot.slane %v279, 2
        %v281 = vmax.f32 %v279, %v280
        %v282 = vrot.slane %v281, 1
        %v283 = vmax.f32 %v281, %v282
        %v284 = vsel %vm264, %v243, 0.0
        %v285 = vsel %vm265, %v267, 0.0
        %v286 = vsel %vm269, %v284, 0.0
        %v287 = vrot.slane %v286, 4
        %v288 = vadd.f32 %v286, %v287
        %v289 = vrot.slane %v288, 2
        %v290 = vadd.f32 %v288, %v289
        %v291 = vrot.slane %v290, 1
        %v292 = vadd.f32 %v290, %v291
        %v293 = vsel %vm269, %v285, 0.0
        %v294 = vrot.slane %v293, 4
        %v295 = vadd.f32 %v293, %v294
        %v296 = vrot.slane %v295, 2
        %v297 = vadd.f32 %v295, %v296
        %v298 = vrot.slane %v297, 1
        %v299 = vadd.f32 %v297, %v298
        %v302 = vcombine.low %v276, %v283
        %v304 = vsub.f32 %v243, %v302
        %v305 = vmul.f32 %v304, 1.442695
        %v306 = vpow.pop %v305
        %v308 = vcombine.high %v306, %v306
        %v310 = vsel %vm269, %v306, 0.0
        %v311 = vrot.slane %v310, 4
        %v312 = vadd.f32 %v310, %v311
        %v313 = vrot.slane %v312, 2
        %v314 = vadd.f32 %v312, %v313
        %v315 = vrot.slane %v314, 1
        %v316 = vadd.f32 %v314, %v315
        %v317 = vsel %vm269, %v308, 0.0
        %v318 = vrot.slane %v317, 4
        %v319 = vadd.f32 %v317, %v318
        %v320 = vrot.slane %v319, 2
        %v321 = vadd.f32 %v319, %v320
        %v322 = vrot.slane %v321, 1
        %v323 = vadd.f32 %v321, %v322
        %v324 = vsub.f32 %v276, %v292
        %v325 = vsub.f32 %v283, %v299
        %v326 = vlog2.pop %v316
        %v327 = vmul.f32 %v326, 0.6931472
        %v328 = vlog2.pop %v323
        %v329 = vmul.f32 %v328, 0.6931472
        %v330 = vadd.f32 %v324, %v327
        %v331 = vadd.f32 %v325, %v329
        %v332 = vsub.f32 0.0, %v330
        %v333 = vsub.f32 0.0, %v331
        %v334 = vmul.f32 %v332, 1.442695
        %v335 = vpow.pop %v334
        %v336 = vmul.f32 %v333, 1.442695
        %v337 = vpow.pop %v336
        %v338 = vsub.f32 1.0, %v335
        %v339 = vsub.f32 1.0, %v337
        %v340 = vmax.f32 %v338, 0.0
        %v341 = vmax.f32 %v339, 0.0
        %v342 = vmul.f32 %v340, %v340
        %v343 = vmul.f32 %v341, %v341
        %v344 = vmul.f32 %v342, 0.25
        %v345 = vmul.f32 %v343, 0.25
        %v346 = vmul.f32 %v344, %v330
        %v347 = vmul.f32 %v345, %v331
        %v348 = vld [vmem:[#allocation2] sm:$0x3]
        %v351 = vcombine.low %v346, %v347
        %v353 = vunpack.c.l.s4 1966171168
        %v354 = vunpack.c.0.s8 %v353
        %v355 = vlaneseq
        %v356 = vshrl.u32 %v355, 7
        %v357 = vsub.s32 %v354, %v356
        %v358 = vrot.slane %v351, %v357
        %v360 = vunpack.c.l.s4 1966171168
        %v361 = vunpack.c.0.s8 %v360
        %v362 = vlaneseq
        %v363 = vshrl.u32 %v362, 7
        %v364 = vsub.s32 %v361, %v363
        %v365 = vrot.slane %v358, %v364
        %v367 = vadd.f32 %v348, %v365
        %v368 = vlaneseq
        %vm369 = vcmp.ge.s32.totalorder %v368, 0
        %vm370 = vcmp.lt.s32.totalorder %v368, 256
        %vm371 = vmand %vm369, %vm370
        %372 = vst.msk [vmem:[#allocation2] sm:$0x3] %vm371, %v367
        // Predicated region
        $region37: #{tpu_custom_call.1} parent=27 // pred_check
          %p373 = pneg %p234
        $region38: #{tpu_custom_call.1} parent=27 // pred_check_branch
          %375 = sbr.rel (%p373) target = $region40
        $region39: #{tpu_custom_call.1} parent=27 // pred_region
          %v376 = vld [vmem:[#allocation2] sm:$0x3]
          %v378 = vlaneseq
          %v379 = vshrl.u32 %v378, 7
          %v380 = vsub.s32 0, %v379
          %v381 = vrot.slane %v376, %v380
          %v382 = vlaneseq
          %v383 = vshrl.u32 %v382, 7
          %v384 = vsub.s32 1, %v383
          %v385 = vrot.slane %v376, %v384
          %vm388 = vcmask 1040384
          %v389 = vsel %vm388, %v381, 0.0
          %v390 = vsel %vm388, %v385, 0.0
          %v391 = vadd.f32 %v389, %v390
          %392 = vadd.xlane.f32.xlu0 %v391
          %v393 = vpop.xlane.xlu0 %392
          %v394 = vrot.slane %v393, 4
          %v395 = vadd.f32 %v393, %v394
          %v396 = vrot.slane %v395, 2
          %v397 = vadd.f32 %v395, %v396
          %v398 = vrot.slane %v397, 1
          %v399 = vadd.f32 %v397, %v398
          %s400 = vtos %v399
          %v401 = vstv %s400
          %vm402 = vcmask 0
          %403 = vst.msk [vmem:[%s233] sm:$0x1] %vm402, %v401
        $region40: #{tpu_custom_call.1} parent=27 // pred_fallthru
          _
        %p404 = scmp.lt.s32.totalorder %s21, 1
        %s405 = scalar_select %p404, %s21, 1
        %p406 = scmp.lt.s32.totalorder %s22, 0
        %s407 = scalar_select %p406, %s22, 0
        %s408 = sadd.s32 %s407, %s405
        %s409 = scalar_lea.vmem %s2, %s408
        // Predicated region
        $region41: #{tpu_custom_call.1} parent=27 // pred_check
          %p410 = pneg %p115
        $region42: #{tpu_custom_call.1} parent=27 // pred_check_branch
          %412 = sbr.rel (%p410) target = $region44
        $region43: #{tpu_custom_call.1} parent=27 // pred_region
          _
        $region44: #{tpu_custom_call.1} parent=27 // pred_fallthru
          _
      $region28: #{tpu_custom_call.1} parent=5 // pred_fallthru
        _
      %p413 = scmp.le.s32.totalorder 2, %s11
      // Predicated region
      $region45: #{tpu_custom_call.1} parent=5 // pred_check
        %p414 = pneg %p413
      $region46: #{tpu_custom_call.1} parent=5 // pred_check_branch
        %416 = sbr.rel (%p414) target = $region48
      $region47: #{tpu_custom_call.1} parent=5 // pred_region
        %s417 = ssub.s32 %s11, 2
        // Predicated region
        $region49: #{tpu_custom_call.1} parent=47 // pred_check
          %p418 = pneg %p121
        $region50: #{tpu_custom_call.1} parent=47 // pred_check_branch
          %420 = sbr.rel (%p418) target = $region52
        $region51: #{tpu_custom_call.1} parent=47 // pred_region
          %p421 = scmp.lt.s32.totalorder %s24, 1
          %s422 = scalar_select %p421, %s24, 1
          %p423 = scmp.lt.s32.totalorder %s25, 0
          %s424 = scalar_select %p423, %s25, 0
          %s425 = sadd.s32 %s424, %s422
          %s426 = scalar_lea.vmem %s2, %s425
        $region52: #{tpu_custom_call.1} parent=47 // pred_fallthru
          _
      $region48: #{tpu_custom_call.1} parent=5 // pred_fallthru
        _
    $region6: #{tpu_custom_call.1} parent=1 // loop_footer
      %s15 = sadd.s32 1, %s11
    $region7: #{tpu_custom_call.1} parent=1 // loop_footer_branch
      %10 = sbr.rel target = $region3
    $region8: #{tpu_custom_call.1} parent=1 // loop_exit
      _
    %427 = vsyncpa [#allocation4], 1
    %s428 = scalar_lea.sflag [#allocation4], 1
    %429 = vsyncpa %s428, 1

</llo_original>
